<compile_context>
chip_gen: v7x
topology: tpu7x:2x2x1
jax: 0.10.0
libtpu: 0.0.40
codegen_flags: <defaults>
</compile_context>

<pallas_src>
import numpy as np
import jax
import jax.numpy as jnp
from jax import lax
from jax.experimental import pallas as pl
from jax.experimental.pallas import tpu as pltpu

EPS = 1e-5                      # nn.BatchNorm2d default eps
MXU_DTYPE = jnp.bfloat16        # operand dtype for the 3x3 conv matmuls


# --------------------------------------------------------------------------
# Per-image channel statistics (sum, sum of squares) for DAR-BN on the
# block input x.  (Stats for the intermediate h are fused into conv1.)
# --------------------------------------------------------------------------
def _per_image_stats(x):
    """Returns (N, 2, C) f32: [:, 0] = sum over H,W ; [:, 1] = sum of squares."""
    N, H, W, C = x.shape

    def kernel(x_ref, s_ref):
        xv = x_ref[0].astype(jnp.float32).reshape(H * W, C)
        s_ref[0, 0:1, :] = jnp.sum(xv, axis=0, keepdims=True)
        s_ref[0, 1:2, :] = jnp.sum(xv * xv, axis=0, keepdims=True)

    return pl.pallas_call(
        kernel,
        out_shape=jax.ShapeDtypeStruct((N, 2, C), jnp.float32),
        grid=(N,),
        in_specs=[pl.BlockSpec((1, H, W, C), lambda n: (n, 0, 0, 0))],
        out_specs=pl.BlockSpec((1, 2, C), lambda n: (n, 0, 0)),
        compiler_params=pltpu.CompilerParams(dimension_semantics=("parallel",)),
    )(x)


def dar_bn_scale_shift_from_stats(stats, noise_mask, bn_weight, bn_bias, hw, eps=EPS):
    """Per-instance (N, C) f32 scale/shift implementing dar_bn from per-image
    (sum, sumsq) statistics.

    Natural instances: BatchNorm2d training semantics (biased variance).
    Noise instances:   torch.var default (unbiased variance), shared affine/eps.
    The affine + ReLU is applied later, fused inside the consuming conv kernel.
    """
    mf = noise_mask.astype(jnp.float32)                       # (N,)
    hw = float(hw)

    s_nat = jnp.sum(stats[:, 0, :] * (1.0 - mf)[:, None], axis=0)
    q_nat = jnp.sum(stats[:, 1, :] * (1.0 - mf)[:, None], axis=0)
    s_nse = jnp.sum(stats[:, 0, :] * mf[:, None], axis=0)
    q_nse = jnp.sum(stats[:, 1, :] * mf[:, None], axis=0)

    cnt_nat = jnp.maximum(jnp.sum(1.0 - mf) * hw, 1.0)        # guard all-noise batch
    cnt_nse = jnp.maximum(jnp.sum(mf) * hw, 1.0)              # guard all-natural batch

    mean_nat = s_nat / cnt_nat
    var_nat = jnp.maximum(q_nat / cnt_nat - mean_nat * mean_nat, 0.0)           # biased
    mean_nse = s_nse / cnt_nse
    var_nse = jnp.maximum(
        (q_nse - cnt_nse * mean_nse * mean_nse) / jnp.maximum(cnt_nse - 1.0, 1.0), 0.0)

    wgt = bn_weight.astype(jnp.float32)
    bia = bn_bias.astype(jnp.float32)
    g_nat = wgt / jnp.sqrt(var_nat + eps)
    g_nse = wgt / jnp.sqrt(var_nse + eps)

    m = mf[:, None]                                           # (N, 1)
    scale = m * g_nse + (1.0 - m) * g_nat                     # (N, C) f32
    shift = m * (bia - mean_nse * g_nse) + (1.0 - m) * (bia - mean_nat * g_nat)
    return scale, shift


# --------------------------------------------------------------------------
# Fused conv kernel: DAR-BN affine + ReLU on the input, in-kernel zero
# padding, per-tap bf16 MXU matmuls (f32 accumulation), fused bias, fused
# shortcut (1x1 conv or identity), optional per-image output statistics.
# --------------------------------------------------------------------------
def _pick_cout_tile(cout):
    if cout <= 256:
        return cout
    if cout % 256 == 0:
        return 256
    if cout % 128 == 0:
        return 128
    # TODO(synk): odd widths (e.g. 320) could be padded to a 256-multiple with
    # a masked tail for a denser MXU / store path.
    return cout


def _pick_batch_tile(n, spatial, bytes_per_image, target_m=256,
                     max_bytes=4 * 1024 * 1024):
    """Pack nb images per block so the matmul M = nb*Ho*Wo approaches 256."""
    nb = 1
    while (nb < n and n % (2 * nb) == 0 and nb * spatial < target_m
           and 2 * nb * bytes_per_image <= max_bytes):
        nb *= 2
    return nb


def _make_conv_kernel(*, nb, H, W, Cin, KH, KW, stride, padding, Ho, Wo, tc,
                      Cs, shortcut_kind, emit_stats, mxu_dtype):
    Hp, Wp = H + 2 * padding, W + 2 * padding
    M = nb * Ho * Wo

    def kernel(*refs):
        it = iter(refs)
        x_ref = next(it)
        scale_ref = next(it)
        shift_ref = next(it)
        w_ref = next(it)
        b_ref = next(it)
        xs_ref = ws_ref = bs_ref = r_ref = None
        if shortcut_kind == "conv":
            xs_ref = next(it)
            ws_ref = next(it)
            bs_ref = next(it)
        elif shortcut_kind == "identity":
            r_ref = next(it)
        o_ref = next(it)
        st_ref = next(it) if emit_stats else None
        xpad_ref = next(it)

        # Fused DAR-BN affine (f32) + ReLU on the input, written into a
        # zero-bordered padded VMEM scratch.  The zero border *is* the conv's
        # zero padding (applied after ReLU, exactly like PyTorch).  The whole
        # scratch is rewritten every grid step, so there is no cross-iteration
        # state and both grid axes stay "parallel".
        a = jnp.maximum(
            x_ref[...].astype(jnp.float32) * scale_ref[...] + shift_ref[...], 0.0)
        if padding:
            zrow = jnp.zeros((nb, padding, Wp, Cin), jnp.float32)
            zcol = jnp.zeros((nb, Hp, padding, Cin), jnp.float32)
            xpad_ref[:, :padding, :, :] = zrow
            xpad_ref[:, Hp - padding:, :, :] = zrow
            xpad_ref[:, :, :padding, :] = zcol
            xpad_ref[:, :, Wp - padding:, :] = zcol
            xpad_ref[:, padding:padding + H, padding:padding + W, :] = a
        else:
            xpad_ref[...] = a

        # One MXU matmul per tap: bf16 operands, f32 accumulation.  Stride-2
        # taps use strided slices of the scratch (no parity copies, no
        # overfetch).
        acc = jnp.zeros((M, tc), jnp.float32)
        for i in range(KH):
            for j in range(KW):
                if stride == 1:
                    win = xpad_ref[:, i:i + Ho, j:j + Wo, :]
                else:
                    win = xpad_ref[:, pl.ds(i, Ho, stride=stride),
                                   pl.ds(j, Wo, stride=stride), :]
                lhs = win.astype(mxu_dtype).reshape(M, Cin)
                acc = acc + jnp.dot(lhs, w_ref[i, j],
                                    preferred_element_type=jnp.float32)
        acc = acc + b_ref[...].astype(jnp.float32)

        # Per-image (sum, sumsq) of the conv output (pre-shortcut) straight
        # from the f32 accumulator, so the next DAR-BN needs no extra HBM pass.
        if emit_stats:
            hn = acc.reshape(nb, Ho * Wo, tc)
            st_ref[:, 0:1, :] = jnp.sum(hn, axis=1, keepdims=True)
            st_ref[:, 1:2, :] = jnp.sum(hn * hn, axis=1, keepdims=True)

        # Fused shortcut: either one extra 1x1 matmul into the same
        # accumulator (kept f32 - it is a tiny fraction of the flops), or the
        # identity residual add.
        if shortcut_kind == "conv":
            xs = xs_ref[...].astype(jnp.float32).reshape(M, Cs)
            acc = acc + jnp.dot(xs, ws_ref[...],
                                preferred_element_type=jnp.float32)
            acc = acc + bs_ref[...].astype(jnp.float32)

        out = acc.reshape(nb, Ho, Wo, tc)
        if shortcut_kind == "identity":
            out = out + r_ref[...].astype(jnp.float32)
        o_ref[...] = out.astype(o_ref.dtype)

    return kernel


def fused_conv(x, w, b, scale, shift, *, stride, padding,
               shortcut=None, emit_stats=False, mxu_dtype=MXU_DTYPE):
    """KxK conv (NHWC x HWIO -> NHWC) with fused per-instance
    relu(x*scale + shift) on the input, fused bias, optional fused shortcut
    (("identity", r) or ("conv", x_sub, ws, bs)) and optional per-image
    (sum, sumsq) output statistics.

    Grid is (Cout_tiles, batch_blocks); weight/bias blocks are constant along
    the inner batch axis so Pallas keeps them VMEM-resident.
    """
    N, H, W, Cin = x.shape
    KH, KW, Cin2, Cout = w.shape
    assert Cin == Cin2
    Ho = (H + 2 * padding - KH) // stride + 1
    Wo = (W + 2 * padding - KW) // stride + 1
    Hp, Wp = H + 2 * padding, W + 2 * padding
    out_dtype = x.dtype

    tc = _pick_cout_tile(Cout)
    n_ct = Cout // tc
    nb = _pick_batch_tile(N, Ho * Wo, H * W * Cin * x.dtype.itemsize)

    shortcut_kind = None if shortcut is None else shortcut[0]
    Cs = 0

    # NOTE: in a full model the bf16 weight cast would be done once at init.
    args = [x,
            scale.reshape(N, 1, 1, Cin).astype(jnp.float32),
            shift.reshape(N, 1, 1, Cin).astype(jnp.float32),
            w.astype(mxu_dtype),
            b.reshape(1, Cout).astype(jnp.float32)]
    in_specs = [
        pl.BlockSpec((nb, H, W, Cin), lambda c, n: (n, 0, 0, 0)),
        pl.BlockSpec((nb, 1, 1, Cin), lambda c, n: (n, 0, 0, 0)),
        pl.BlockSpec((nb, 1, 1, Cin), lambda c, n: (n, 0, 0, 0)),
        pl.BlockSpec((KH, KW, Cin, tc), lambda c, n: (0, 0, 0, c)),   # resident
        pl.BlockSpec((1, tc), lambda c, n: (0, c)),                    # resident
    ]
    if shortcut_kind == "conv":
        _, xs, ws, bs = shortcut
        Cs = xs.shape[-1]
        assert xs.shape == (N, Ho, Wo, Cs)
        args += [xs,
                 ws.reshape(Cs, Cout).astype(jnp.float32),
                 bs.reshape(1, Cout).astype(jnp.float32)]
        in_specs += [
            pl.BlockSpec((nb, Ho, Wo, Cs), lambda c, n: (n, 0, 0, 0)),
            pl.BlockSpec((Cs, tc), lambda c, n: (0, c)),               # resident
            pl.BlockSpec((1, tc), lambda c, n: (0, c)),                # resident
        ]
    elif shortcut_kind == "identity":
        r = shortcut[1]
        assert r.shape == (N, Ho, Wo, Cout)
        args.append(r)
        in_specs.append(pl.BlockSpec((nb, Ho, Wo, tc), lambda c, n: (n, 0, 0, c)))

    out_shape = [jax.ShapeDtypeStruct((N, Ho, Wo, Cout), out_dtype)]
    out_specs = [pl.BlockSpec((nb, Ho, Wo, tc), lambda c, n: (n, 0, 0, c))]
    if emit_stats:
        out_shape.append(jax.ShapeDtypeStruct((N, 2, Cout), jnp.float32))
        out_specs.append(pl.BlockSpec((nb, 2, tc), lambda c, n: (n, 0, c)))

    kernel = _make_conv_kernel(nb=nb, H=H, W=W, Cin=Cin, KH=KH, KW=KW,
                               stride=stride, padding=padding, Ho=Ho, Wo=Wo,
                               tc=tc, Cs=Cs, shortcut_kind=shortcut_kind,
                               emit_stats=emit_stats, mxu_dtype=mxu_dtype)

    # Rough per-step VMEM working set; only raise the scoped limit when the
    # default would actually be tight (keeps v7x's smaller VMEM safe).
    est = (2 * nb * H * W * Cin * 4
           + 2 * KH * KW * Cin * tc * 2
           + 2 * nb * Ho * Wo * tc * 4
           + nb * Hp * Wp * Cin * 4
           + nb * Ho * Wo * tc * 4)
    if shortcut_kind == "conv":
        est += 2 * (nb * Ho * Wo * Cs + Cs * tc) * 4
    elif shortcut_kind == "identity":
        est += 2 * nb * Ho * Wo * tc * 4
    vmem_limit = int(min(1.8 * est, 100 * 1024 * 1024)) if est > 24 * 1024 * 1024 else None

    flops = 2 * N * Ho * Wo * KH * KW * Cin * Cout
    if shortcut_kind == "conv":
        flops += 2 * N * Ho * Wo * Cs * Cout
    bytes_accessed = int(sum(int(np.prod(a.shape)) * a.dtype.itemsize for a in args)
                         + N * Ho * Wo * Cout * jnp.dtype(out_dtype).itemsize)

    outs = pl.pallas_call(
        kernel,
        out_shape=tuple(out_shape),
        grid=(n_ct, N // nb),
        in_specs=in_specs,
        out_specs=tuple(out_specs),
        scratch_shapes=[pltpu.VMEM((nb, Hp, Wp, Cin), jnp.float32)],
        compiler_params=pltpu.CompilerParams(
            dimension_semantics=("parallel", "parallel"),
            vmem_limit_bytes=vmem_limit),
        cost_estimate=pl.CostEstimate(flops=flops, transcendentals=0,
                                      bytes_accessed=bytes_accessed),
    )(*args)

    if emit_stats:
        return outs[0], outs[1]
    return outs[0] if isinstance(outs, (tuple, list)) else outs


# --------------------------------------------------------------------------
# wide_basic forward
# --------------------------------------------------------------------------
def init_wide_basic_params(key, in_planes, planes, stride):
    ks = jax.random.split(key, 8)

    def conv_w(k, kh, kw, cin, cout):
        fan_in = kh * kw * cin
        return jax.random.normal(k, (kh, kw, cin, cout), jnp.float32) * np.sqrt(2.0 / fan_in)

    params = {
        "bn1_w": 1.0 + 0.1 * jax.random.normal(ks[0], (in_planes,), jnp.float32),
        "bn1_b": 0.1 * jax.random.normal(ks[1], (in_planes,), jnp.float32),
        "w1": conv_w(ks[2], 3, 3, in_planes, planes),
        "b1": 0.1 * jax.random.normal(ks[3], (planes,), jnp.float32),
        "bn2_w": 1.0 + 0.1 * jax.random.normal(ks[4], (planes,), jnp.float32),
        "bn2_b": 0.1 * jax.random.normal(ks[5], (planes,), jnp.float32),
        "w2": conv_w(ks[6], 3, 3, planes, planes),
        "b2": 0.1 * jax.random.normal(ks[7], (planes,), jnp.float32),
    }
    if stride != 1 or in_planes != planes:
        k1, k2 = jax.random.split(jax.random.fold_in(key, 99))
        params["ws"] = conv_w(k1, 1, 1, in_planes, planes)
        params["bs"] = 0.1 * jax.random.normal(k2, (planes,), jnp.float32)
    return params


def wide_basic_forward(params, x, noise_mask, stride):
    N, H, W, Cin = x.shape

    # DAR-BN 1 on the block input: one small stats pass over x; the affine +
    # ReLU is fused into conv1.  (In a full network this stats pass can be
    # fused into the previous block's conv2 epilogue, like bn2's is below.)
    stats_x = _per_image_stats(x)
    scale1, shift1 = dar_bn_scale_shift_from_stats(
        stats_x, noise_mask, params["bn1_w"], params["bn1_b"], H * W)

    # conv1 (3x3, stride 1) with fused bn1-affine + ReLU; also emits per-image
    # (sum, sumsq) of its output h so bn2 needs no extra pass over h.
    h, stats_h = fused_conv(x, params["w1"], params["b1"], scale1, shift1,
                            stride=1, padding=1, emit_stats=True)
    # TODO(synk): nn.Dropout treated as identity (eval mode); PyTorch train-mode RNG not reproducible.

    Hh, Wh = h.shape[1], h.shape[2]
    scale2, shift2 = dar_bn_scale_shift_from_stats(
        stats_h, noise_mask, params["bn2_w"], params["bn2_b"], Hh * Wh)

    if "ws" in params:
        xs = x if stride == 1 else x[:, ::stride, ::stride, :]
        shortcut = ("conv", xs, params["ws"], params["bs"])
    else:
        shortcut = ("identity", x)

    # conv2 (3x3, stride s) with fused bn2-affine + ReLU on its input, fused
    # bias, and the shortcut (1x1 conv or identity) folded into the kernel.
    return fused_conv(h, params["w2"], params["b2"], scale2, shift2,
                      stride=stride, padding=1, shortcut=shortcut)


# --------------------------------------------------------------------------
# Pure-JAX / numpy reference for verification
# --------------------------------------------------------------------------
def ref_forward(params, x, noise_mask, stride, eps=EPS):
    mask = np.asarray(noise_mask)

    def darbn_relu_ref(a, w, b):
        a = np.asarray(a, dtype=np.float64)
        w = np.asarray(w, dtype=np.float64)
        b = np.asarray(b, dtype=np.float64)
        nat, nse = a[~mask], a[mask]
        m_nat, v_nat = nat.mean(axis=(0, 1, 2)), nat.var(axis=(0, 1, 2))           # biased
        m_nse, v_nse = nse.mean(axis=(0, 1, 2)), nse.var(axis=(0, 1, 2), ddof=1)   # unbiased
        out = np.empty_like(a)
        out[~mask] = (nat - m_nat) / np.sqrt(v_nat + eps) * w + b
        out[mask] = (nse - m_nse) / np.sqrt(v_nse + eps) * w + b
        return jnp.asarray(np.maximum(out, 0.0), dtype=jnp.float32)

    def conv_ref(a, w, b, s, pad):
        y = lax.conv_general_dilated(
            a, w, window_strides=(s, s), padding=[(pad, pad), (pad, pad)],
            dimension_numbers=("NHWC", "HWIO", "NHWC"),
            precision=lax.Precision.HIGHEST)
        return y + b[None, None, None, :]

    h = darbn_relu_ref(x, params["bn1_w"], params["bn1_b"])
    h = conv_ref(h, params["w1"], params["b1"], 1, 1)
    h = darbn_relu_ref(h, params["bn2_w"], params["bn2_b"])
    sc = conv_ref(x, params["ws"], params["bs"], stride, 0) if "ws" in params else x
    return conv_ref(h, params["w2"], params["b2"], stride, 1) + sc


if __name__ == "__main__":
    root = jax.random.PRNGKey(0)

    cases = [
        # (N, in_planes, planes, H, W, stride)
        (4, 4, 8, 16, 16, 2),     # downsampling block: fused 1x1 shortcut, stride-2 taps, nb=4
        (2, 32, 32, 16, 16, 1),   # identity shortcut, stride-1 taps
        (2, 64, 512, 8, 8, 2),    # Cout tiling (tc=256 x 2) + batch-block M shaping
    ]

    for idx, (N, in_planes, planes, H, W, stride) in enumerate(cases):
        kx, kp = jax.random.split(jax.random.fold_in(root, idx))
        x = jax.random.normal(kx, (N, H, W, in_planes), jnp.float32)
        noise_mask = jnp.array([(i % 2) == 1 for i in range(N)])
        params = init_wide_basic_params(kp, in_planes, planes, stride)

        out = jax.block_until_ready(wide_basic_forward(params, x, noise_mask, stride))
        ref = jax.block_until_ready(ref_forward(params, x, noise_mask, stride))

        Ho = (H + 2 - 3) // stride + 1
        assert out.shape == ref.shape == (N, Ho, Ho, planes)
        # bf16 MXU operands with f32 accumulation -> slightly looser tolerance
        # than a pure-f32 kernel.
        np.testing.assert_allclose(np.asarray(out), np.asarray(ref),
                                   rtol=3e-2, atol=3e-2)

    print("KERNEL_OK")
</pallas_src>

<mosaic_0001>
module attributes {stable_mosaic.version = 11 : i64} {
  func.func @kernel(%arg0: i32, %arg1: memref<1x16x16x4xf32, #tpu.memory_space<vmem>>, %arg2: memref<1x2x4xf32, #tpu.memory_space<vmem>>) attributes {dimension_semantics = [#tpu.dimension_semantics<parallel>], iteration_bounds = array<i64: 4>, scalar_prefetch = 0 : i64, scratch_operands = 0 : i64, tpu.core_type = #tpu.core_type<tc>, window_params = [{transform_indices = @transform_0, window_bounds = array<i64: 1, 16, 16, 4>}, {transform_indices = @transform_1, window_bounds = array<i64: 1, 2, 4>}]} {
    %c0 = arith.constant 0 : index
    %c0_0 = arith.constant 0 : index
    %c0_1 = arith.constant 0 : index
    %c0_2 = arith.constant 0 : index
    %0 = vector.load %arg1[%c0, %c0_0, %c0_1, %c0_2] : memref<1x16x16x4xf32, #tpu.memory_space<vmem>>, vector<1x16x16x4xf32>
    %1 = vector.shape_cast %0 : vector<1x16x16x4xf32> to vector<16x16x4xf32>
    %2 = vector.shape_cast %1 : vector<16x16x4xf32> to vector<256x4xf32>
    %cst = arith.constant dense<0.000000e+00> : vector<4xf32>
    %3 = vector.multi_reduction <add>, %2, %cst [0] : vector<256x4xf32> to vector<4xf32>
    %4 = vector.shape_cast %3 : vector<4xf32> to vector<1x4xf32>
    %c0_3 = arith.constant 0 : index
    %c0_4 = arith.constant 0 : index
    %c0_5 = arith.constant 0 : index
    %5 = vector.load %arg2[%c0_3, %c0_4, %c0_5] : memref<1x2x4xf32, #tpu.memory_space<vmem>>, vector<1x1x4xf32>
    %6 = vector.shape_cast %5 : vector<1x1x4xf32> to vector<1x4xf32>
    %7 = vector.shape_cast %4 : vector<1x4xf32> to vector<1x1x4xf32>
    tpu.vector_store %arg2[%c0_3, %c0_4, %c0_5], %7 {strides = array<i32>} : memref<1x2x4xf32, #tpu.memory_space<vmem>>, vector<1x1x4xf32>,
    %8 = arith.mulf %2, %2 : vector<256x4xf32>
    %cst_6 = arith.constant dense<0.000000e+00> : vector<4xf32>
    %9 = vector.multi_reduction <add>, %8, %cst_6 [0] : vector<256x4xf32> to vector<4xf32>
    %10 = vector.shape_cast %9 : vector<4xf32> to vector<1x4xf32>
    %c0_7 = arith.constant 0 : index
    %c1 = arith.constant 1 : index
    %c0_8 = arith.constant 0 : index
    %11 = vector.load %arg2[%c0_7, %c1, %c0_8] : memref<1x2x4xf32, #tpu.memory_space<vmem>>, vector<1x1x4xf32>
    %12 = vector.shape_cast %11 : vector<1x1x4xf32> to vector<1x4xf32>
    %13 = vector.shape_cast %10 : vector<1x4xf32> to vector<1x1x4xf32>
    tpu.vector_store %arg2[%c0_7, %c1, %c0_8], %13 {strides = array<i32>} : memref<1x2x4xf32, #tpu.memory_space<vmem>>, vector<1x1x4xf32>,
    return
  }
  func.func @transform_0(%arg0: i32) -> (i32, i32, i32, i32) {
    %c0_i32 = arith.constant 0 : i32
    %c0_i32_0 = arith.constant 0 : i32
    %c0_i32_1 = arith.constant 0 : i32
    %c0_i32_2 = arith.constant 0 : i32
    return %arg0, %c0_i32, %c0_i32_0, %c0_i32_1 : i32, i32, i32, i32
  }
  func.func @transform_1(%arg0: i32) -> (i32, i32, i32) {
    %c0_i32 = arith.constant 0 : i32
    %c0_i32_0 = arith.constant 0 : i32
    %c0_i32_1 = arith.constant 0 : i32
    return %arg0, %c0_i32, %c0_i32_0 : i32, i32, i32
  }
}

</mosaic_0001>

<llo_original>
// kernel: tpu_custom_call.1
$region0: #{tpu_custom_call.1}
  #allocation0 [shape = 'u32[]', space=smem, size = 0x4, offset = 0x4, fixed_abs, tag = 'smem constant byte address 0x4 - core index']
  #allocation1 [shape = 'u32[144,128]{1,0:T(1,128)}', space=vmem, size = 0x12000, scoped, tag = 'internal scratch']
  %s0 = inlined_call_operand.vmem [shape: f32[4,16,16,4], index: 0, kind: input, shape index: {}]
  %s1 = inlined_call_operand.hbm [shape: f32[4,2,4], index: 1, kind: output, shape index: {}]
  %s2 = sld [smem:[#allocation0]]
  $region37: #{tpu_custom_call.1} parent=0
    _
  %s4 = ssub.s32 1, %s2
  %s5 = scalar_select 0, %s4, %s2
  $region1: #{tpu_custom_call.1} parent=0
    #allocation2 [shape = 'u8[2048]{0}', space=vmem, size = 0x800, scoped, tag = 'output window, operand 0']
    #allocation3 [shape = 's32[2]{0}', space=sflag, size = 0x8, scoped, tag = 'scoped memory for tpu_custom_call.1']
    %6 = vsyncpa [#allocation3], 0
    %s7 = scalar_lea.sflag [#allocation3], 1
    %8 = vsyncpa %s7, 0
    loop: start=0, step=1, limit=6
    $region2: #{tpu_custom_call.1} parent=1 // loop_pre_header
      _
    $region3: #{tpu_custom_call.1} parent=1 // loop_header
      %s10 = sphi 0, %s14
      %p11 = scmp.ge.s32.totalorder %s10, 6
      %s20 = sphi 0, %s22
      %s23 = sphi 0, %s20
      %s24 = sphi 0, %s23
      %s40 = sphi 0, %s24
      %s46 = sphi 0, %s48
      %s49 = sphi 0, %s46
      %s50 = sphi 0, %s49
      %s66 = sphi 0, %s50
    $region4: #{tpu_custom_call.1} parent=1 // loop_header_branch
      %13 = sbr.rel (%p11) target = $region8
    $region5: #{tpu_custom_call.1} parent=1 // loop_body
      %s15 = ssub.s32 %s10, 1
      %s16 = ssub.s32 %s10, 2
      %s17 = sadd.s32 %s10, 1
      %s18 = ssub.s32 %s10, %s17
      %p19 = scmp.eq.s32.totalorder %s18, 0
      %s21 = sadd.s32 %s20, 1
      %s22 = scalar_select %p19, %s20, %s21
      %p25 = pneg %p19
      %p26 = scmp.eq.s32.totalorder %s10, 3
      %p27 = por %p25, %p26
      %p28 = scmp.ne.s32.totalorder %s20, %s23
      %p29 = scmp.eq.s32.totalorder %s10, 0
      %p30 = por %p28, %p29
      %p31 = scmp.ne.s32.totalorder %s20, %s23
      %p32 = scmp.eq.s32.totalorder %s15, 3
      %p33 = por %p31, %p32
      %p34 = scmp.ne.s32.totalorder %s23, %s24
      %p35 = scmp.eq.s32.totalorder %s15, 0
      %p36 = por %p34, %p35
      %p37 = scmp.ne.s32.totalorder %s23, %s24
      %p38 = scmp.eq.s32.totalorder %s16, 3
      %p39 = por %p37, %p38
      %p41 = scmp.ne.s32.totalorder %s24, %s40
      %p42 = scmp.eq.s32.totalorder %s16, 0
      %p43 = por %p41, %p42
      %s44 = ssub.s32 %s10, %s17
      %p45 = scmp.eq.s32.totalorder %s44, 0
      %s47 = sadd.s32 %s46, 1
      %s48 = scalar_select %p45, %s46, %s47
      %p51 = pneg %p45
      %p52 = scmp.eq.s32.totalorder %s10, 3
      %p53 = por %p51, %p52
      %p54 = scmp.ne.s32.totalorder %s46, %s49
      %p55 = scmp.eq.s32.totalorder %s10, 0
      %p56 = por %p54, %p55
      %p57 = scmp.ne.s32.totalorder %s46, %s49
      %p58 = scmp.eq.s32.totalorder %s15, 3
      %p59 = por %p57, %p58
      %p60 = scmp.ne.s32.totalorder %s49, %s50
      %p61 = scmp.eq.s32.totalorder %s15, 0
      %p62 = por %p60, %p61
      %p63 = scmp.ne.s32.totalorder %s49, %s50
      %p64 = scmp.eq.s32.totalorder %s16, 3
      %p65 = por %p63, %p64
      %p67 = scmp.ne.s32.totalorder %s50, %s66
      %p68 = scmp.eq.s32.totalorder %s16, 0
      %p69 = por %p67, %p68
      %p70 = scmp.le.s32.totalorder 1, %s10
      %p71 = scmp.lt.s32.totalorder %s10, 5
      %p72 = pnand %p70, %p71
      %p73 = pneg %p72
      // Predicated region
      $region9: #{tpu_custom_call.1} parent=5 // pred_check
        _
      $region10: #{tpu_custom_call.1} parent=5 // pred_check_branch
        %75 = sbr.rel (%p72) target = $region12
      $region11: #{tpu_custom_call.1} parent=5 // pred_region
        %s76 = ssub.s32 %s10, 1
      $region12: #{tpu_custom_call.1} parent=5 // pred_fallthru
        _
      %p77 = scmp.lt.s32.totalorder %s10, 4
      // Predicated region
      $region13: #{tpu_custom_call.1} parent=5 // pred_check
        %p78 = pneg %p77
      $region14: #{tpu_custom_call.1} parent=5 // pred_check_branch
        %80 = sbr.rel (%p78) target = $region16
      $region15: #{tpu_custom_call.1} parent=5 // pred_region
        // Predicated region
        $region17: #{tpu_custom_call.1} parent=15 // pred_check
          %p81 = pneg %p30
        $region18: #{tpu_custom_call.1} parent=15 // pred_check_branch
          %83 = sbr.rel (%p81) target = $region20
        $region19: #{tpu_custom_call.1} parent=15 // pred_region
          %p84 = scmp.lt.s32.totalorder %s10, 3
          %s85 = scalar_select %p84, %s10, 3
          %s86 = smul.addr %s85, 32
          %s87 = smul.addr %s86, 8
          %s88 = scalar_lea.vmem %s0, %s87
        $region20: #{tpu_custom_call.1} parent=15 // pred_fallthru
          _
      $region16: #{tpu_custom_call.1} parent=5 // pred_fallthru
        _
      %p89 = scmp.le.s32.totalorder 1, %s10
      %p90 = scmp.lt.s32.totalorder %s10, 5
      %p91 = pnand %p89, %p90
      %p92 = pneg %p91
      // Predicated region
      $region21: #{tpu_custom_call.1} parent=5 // pred_check
        _
      $region22: #{tpu_custom_call.1} parent=5 // pred_check_branch
        %94 = sbr.rel (%p91) target = $region24
      $region23: #{tpu_custom_call.1} parent=5 // pred_region
        %s95 = ssub.s32 %s10, 1
        %p96 = scmp.lt.s32.totalorder %s15, 3
        %s97 = scalar_select %p96, %s15, 3
        %s98 = smul.addr %s97, 32
        %s99 = smul.addr %s98, 8
        %s100 = scalar_lea.vmem %s0, %s99
        %p101 = pneg %p36
        %p102 = pneg %p33
        %p103 = pneg %p62
        %p104 = pneg %p59
        %s105 = sand.u32 %s49, 1
        %s106 = scalar_lea.sflag [#allocation3], %s105
        %s107 = sand.u32 %s49, 1
        %s108 = smul.addr %s107, 2
        %s109 = scalar_lea.vmem [#allocation2], %s108
        %p110 = scmp.lt.s32.totalorder %s15, 3
        %s111 = scalar_select %p110, %s15, 3
        %s112 = smul.addr %s111, 32
        %s113 = smul.addr %s112, 8
        %s114 = scalar_lea.vmem %s0, %s113
        %v115 = vld [vmem:[%s114] sm:$0xff]
        %v116 = vld [vmem:[%s114 + $0x8] sm:$0xff]
        %v117 = vld [vmem:[%s114 + $0x10] sm:$0xff]
        %v118 = vld [vmem:[%s114 + $0x18] sm:$0xff]
        %v119 = vld [vmem:[%s114 + $0x20] sm:$0xff]
        %v120 = vld [vmem:[%s114 + $0x28] sm:$0xff]
        %v121 = vld [vmem:[%s114 + $0x30] sm:$0xff]
        %v122 = vld [vmem:[%s114 + $0x38] sm:$0xff]
        %v123 = vld [vmem:[%s114 + $0x40] sm:$0xff]
        %v124 = vld [vmem:[%s114 + $0x48] sm:$0xff]
        %v125 = vld [vmem:[%s114 + $0x50] sm:$0xff]
        %v126 = vld [vmem:[%s114 + $0x58] sm:$0xff]
        %v127 = vld [vmem:[%s114 + $0x60] sm:$0xff]
        %v128 = vld [vmem:[%s114 + $0x68] sm:$0xff]
        %v129 = vld [vmem:[%s114 + $0x70] sm:$0xff]
        %v130 = vld [vmem:[%s114 + $0x78] sm:$0xff]
        %v131 = vld [vmem:[%s114 + $0x80] sm:$0xff]
        %v132 = vld [vmem:[%s114 + $0x88] sm:$0xff]
        %v133 = vld [vmem:[%s114 + $0x90] sm:$0xff]
        %v134 = vld [vmem:[%s114 + $0x98] sm:$0xff]
        %v135 = vld [vmem:[%s114 + $0xa0] sm:$0xff]
        %v136 = vld [vmem:[%s114 + $0xa8] sm:$0xff]
        %v137 = vld [vmem:[%s114 + $0xb0] sm:$0xff]
        %v138 = vld [vmem:[%s114 + $0xb8] sm:$0xff]
        %v139 = vld [vmem:[%s114 + $0xc0] sm:$0xff]
        %v140 = vld [vmem:[%s114 + $0xc8] sm:$0xff]
        %v141 = vld [vmem:[%s114 + $0xd0] sm:$0xff]
        %v142 = vld [vmem:[%s114 + $0xd8] sm:$0xff]
        %v143 = vld [vmem:[%s114 + $0xe0] sm:$0xff]
        %v144 = vld [vmem:[%s114 + $0xe8] sm:$0xff]
        %v145 = vld [vmem:[%s114 + $0xf0] sm:$0xff]
        %v146 = vld [vmem:[%s114 + $0xf8] sm:$0xff]
        %vm147 = vcmask 31744
        %v148 = vsel %vm147, %v115, 0.0
        %v149 = vsel %vm147, %v116, 0.0
        %v150 = vadd.f32 %v148, %v149
        %v151 = vsel %vm147, %v117, 0.0
        %v152 = vadd.f32 %v150, %v151
        %v153 = vsel %vm147, %v118, 0.0
        %v154 = vadd.f32 %v152, %v153
        %v155 = vsel %vm147, %v119, 0.0
        %v156 = vadd.f32 %v154, %v155
        %v157 = vsel %vm147, %v120, 0.0
        %v158 = vadd.f32 %v156, %v157
        %v159 = vsel %vm147, %v121, 0.0
        %v160 = vadd.f32 %v158, %v159
        %v161 = vsel %vm147, %v122, 0.0
        %v162 = vadd.f32 %v160, %v161
        %v163 = vsel %vm147, %v123, 0.0
        %v164 = vadd.f32 %v162, %v163
        %v165 = vsel %vm147, %v124, 0.0
        %v166 = vadd.f32 %v164, %v165
        %v167 = vsel %vm147, %v125, 0.0
        %v168 = vadd.f32 %v166, %v167
        %v169 = vsel %vm147, %v126, 0.0
        %v170 = vadd.f32 %v168, %v169
        %v171 = vsel %vm147, %v127, 0.0
        %v172 = vadd.f32 %v170, %v171
        %v173 = vsel %vm147, %v128, 0.0
        %v174 = vadd.f32 %v172, %v173
        %v175 = vsel %vm147, %v129, 0.0
        %v176 = vadd.f32 %v174, %v175
        %v177 = vsel %vm147, %v130, 0.0
        %v178 = vadd.f32 %v176, %v177
        %v179 = vsel %vm147, %v131, 0.0
        %v180 = vadd.f32 %v178, %v179
        %v181 = vsel %vm147, %v132, 0.0
        %v182 = vadd.f32 %v180, %v181
        %v183 = vsel %vm147, %v133, 0.0
        %v184 = vadd.f32 %v182, %v183
        %v185 = vsel %vm147, %v134, 0.0
        %v186 = vadd.f32 %v184, %v185
        %v187 = vsel %vm147, %v135, 0.0
        %v188 = vadd.f32 %v186, %v187
        %v189 = vsel %vm147, %v136, 0.0
        %v190 = vadd.f32 %v188, %v189
        %v191 = vsel %vm147, %v137, 0.0
        %v192 = vadd.f32 %v190, %v191
        %v193 = vsel %vm147, %v138, 0.0
        %v194 = vadd.f32 %v192, %v193
        %v195 = vsel %vm147, %v139, 0.0
        %v196 = vadd.f32 %v194, %v195
        %v197 = vsel %vm147, %v140, 0.0
        %v198 = vadd.f32 %v196, %v197
        %v199 = vsel %vm147, %v141, 0.0
        %v200 = vadd.f32 %v198, %v199
        %v201 = vsel %vm147, %v142, 0.0
        %v202 = vadd.f32 %v200, %v201
        %v203 = vsel %vm147, %v143, 0.0
        %v204 = vadd.f32 %v202, %v203
        %v205 = vsel %vm147, %v144, 0.0
        %v206 = vadd.f32 %v204, %v205
        %v207 = vsel %vm147, %v145, 0.0
        %v208 = vadd.f32 %v206, %v207
        %v209 = vsel %vm147, %v146, 0.0
        %v210 = vadd.f32 %v208, %v209
        %v211 = vrot.slane %v210, 4
        %v212 = vadd.f32 %v210, %v211
        %v213 = vrot.slane %v212, 2
        %v214 = vadd.f32 %v212, %v213
        %v215 = vrot.slane %v214, 1
        %v216 = vadd.f32 %v214, %v215
        %vm217 = vcmask 24576
        %218 = vst.msk [vmem:[%s109] sm:$0x1] %vm217, %v216
        %v219 = vmul.f32 %v115, %v115
        %v220 = vmul.f32 %v116, %v116
        %v221 = vmul.f32 %v117, %v117
        %v222 = vmul.f32 %v118, %v118
        %v223 = vmul.f32 %v119, %v119
        %v224 = vmul.f32 %v120, %v120
        %v225 = vmul.f32 %v121, %v121
        %v226 = vmul.f32 %v122, %v122
        %v227 = vmul.f32 %v123, %v123
        %v228 = vmul.f32 %v124, %v124
        %v229 = vmul.f32 %v125, %v125
        %v230 = vmul.f32 %v126, %v126
        %v231 = vmul.f32 %v127, %v127
        %v232 = vmul.f32 %v128, %v128
        %v233 = vmul.f32 %v129, %v129
        %v234 = vmul.f32 %v130, %v130
        %v235 = vmul.f32 %v131, %v131
        %v236 = vmul.f32 %v132, %v132
        %v237 = vmul.f32 %v133, %v133
        %v238 = vmul.f32 %v134, %v134
        %v239 = vmul.f32 %v135, %v135
        %v240 = vmul.f32 %v136, %v136
        %v241 = vmul.f32 %v137, %v137
        %v242 = vmul.f32 %v138, %v138
        %v243 = vmul.f32 %v139, %v139
        %v244 = vmul.f32 %v140, %v140
        %v245 = vmul.f32 %v141, %v141
        %v246 = vmul.f32 %v142, %v142
        %v247 = vmul.f32 %v143, %v143
        %v248 = vmul.f32 %v144, %v144
        %v249 = vmul.f32 %v145, %v145
        %v250 = vmul.f32 %v146, %v146
        %v251 = vsel %vm147, %v219, 0.0
        %v252 = vsel %vm147, %v220, 0.0
        %v253 = vadd.f32 %v251, %v252
        %v254 = vsel %vm147, %v221, 0.0
        %v255 = vadd.f32 %v253, %v254
        %v256 = vsel %vm147, %v222, 0.0
        %v257 = vadd.f32 %v255, %v256
        %v258 = vsel %vm147, %v223, 0.0
        %v259 = vadd.f32 %v257, %v258
        %v260 = vsel %vm147, %v224, 0.0
        %v261 = vadd.f32 %v259, %v260
        %v262 = vsel %vm147, %v225, 0.0
        %v263 = vadd.f32 %v261, %v262
        %v264 = vsel %vm147, %v226, 0.0
        %v265 = vadd.f32 %v263, %v264
        %v266 = vsel %vm147, %v227, 0.0
        %v267 = vadd.f32 %v265, %v266
        %v268 = vsel %vm147, %v228, 0.0
        %v269 = vadd.f32 %v267, %v268
        %v270 = vsel %vm147, %v229, 0.0
        %v271 = vadd.f32 %v269, %v270
        %v272 = vsel %vm147, %v230, 0.0
        %v273 = vadd.f32 %v271, %v272
        %v274 = vsel %vm147, %v231, 0.0
        %v275 = vadd.f32 %v273, %v274
        %v276 = vsel %vm147, %v232, 0.0
        %v277 = vadd.f32 %v275, %v276
        %v278 = vsel %vm147, %v233, 0.0
        %v279 = vadd.f32 %v277, %v278
        %v280 = vsel %vm147, %v234, 0.0
        %v281 = vadd.f32 %v279, %v280
        %v282 = vsel %vm147, %v235, 0.0
        %v283 = vadd.f32 %v281, %v282
        %v284 = vsel %vm147, %v236, 0.0
        %v285 = vadd.f32 %v283, %v284
        %v286 = vsel %vm147, %v237, 0.0
        %v287 = vadd.f32 %v285, %v286
        %v288 = vsel %vm147, %v238, 0.0
        %v289 = vadd.f32 %v287, %v288
        %v290 = vsel %vm147, %v239, 0.0
        %v291 = vadd.f32 %v289, %v290
        %v292 = vsel %vm147, %v240, 0.0
        %v293 = vadd.f32 %v291, %v292
        %v294 = vsel %vm147, %v241, 0.0
        %v295 = vadd.f32 %v293, %v294
        %v296 = vsel %vm147, %v242, 0.0
        %v297 = vadd.f32 %v295, %v296
        %v298 = vsel %vm147, %v243, 0.0
        %v299 = vadd.f32 %v297, %v298
        %v300 = vsel %vm147, %v244, 0.0
        %v301 = vadd.f32 %v299, %v300
        %v302 = vsel %vm147, %v245, 0.0
        %v303 = vadd.f32 %v301, %v302
        %v304 = vsel %vm147, %v246, 0.0
        %v305 = vadd.f32 %v303, %v304
        %v306 = vsel %vm147, %v247, 0.0
        %v307 = vadd.f32 %v305, %v306
        %v308 = vsel %vm147, %v248, 0.0
        %v309 = vadd.f32 %v307, %v308
        %v310 = vsel %vm147, %v249, 0.0
        %v311 = vadd.f32 %v309, %v310
        %v312 = vsel %vm147, %v250, 0.0
        %v313 = vadd.f32 %v311, %v312
        %v314 = vrot.slane %v313, 4
        %v315 = vadd.f32 %v313, %v314
        %v316 = vrot.slane %v315, 2
        %v317 = vadd.f32 %v315, %v316
        %v318 = vrot.slane %v317, 1
        %v319 = vadd.f32 %v317, %v318
        %320 = vst.msk [vmem:[%s109 + $0x1] sm:$0x1] %vm217, %v319
        %s321 = sand.u32 %s49, 1
        %s322 = scalar_lea.sflag [#allocation3], %s321
        %s323 = sand.u32 %s49, 1
        %s324 = smul.addr %s323, 2
        %s325 = scalar_lea.vmem [#allocation2], %s324
        // Predicated region
        $region25: #{tpu_custom_call.1} parent=23 // pred_check
          %p326 = pneg %p59
        $region26: #{tpu_custom_call.1} parent=23 // pred_check_branch
          %328 = sbr.rel (%p326) target = $region28
        $region27: #{tpu_custom_call.1} parent=23 // pred_region
          %s330 = ssub.s32 32, 32
          %331 = vsyncadd %s322, %s330
          %s332 = smul.addr %s15, 32
          %s333 = scalar_lea.hbm %s1, %s332
          %s335 = sshll.u32 %s325, 4
          %s336 = int_to_ptr.vmem [resolvable:$true] %s335
          %338 = dma.vmem_to_hbm [thread:$0]  %s336, 32, %s333, %s322
        $region28: #{tpu_custom_call.1} parent=23 // pred_fallthru
          _
      $region24: #{tpu_custom_call.1} parent=5 // pred_fallthru
        _
      %p339 = scmp.le.s32.totalorder 2, %s10
      // Predicated region
      $region29: #{tpu_custom_call.1} parent=5 // pred_check
        %p340 = pneg %p339
      $region30: #{tpu_custom_call.1} parent=5 // pred_check_branch
        %342 = sbr.rel (%p340) target = $region32
      $region31: #{tpu_custom_call.1} parent=5 // pred_region
        %s343 = ssub.s32 %s10, 2
        // Predicated region
        $region33: #{tpu_custom_call.1} parent=31 // pred_check
          %p344 = pneg %p65
        $region34: #{tpu_custom_call.1} parent=31 // pred_check_branch
          %346 = sbr.rel (%p344) target = $region36
        $region35: #{tpu_custom_call.1} parent=31 // pred_region
          %s347 = sand.u32 %s50, 1
          %s348 = scalar_lea.sflag [#allocation3], %s347
          %s349 = sand.u32 %s50, 1
          %s350 = smul.addr %s349, 2
          %s351 = scalar_lea.vmem [#allocation2], %s350
          %352 = dma.done %s348, 32
        $region36: #{tpu_custom_call.1} parent=31 // pred_fallthru
          _
      $region32: #{tpu_custom_call.1} parent=5 // pred_fallthru
        _
    $region6: #{tpu_custom_call.1} parent=1 // loop_footer
      %s14 = sadd.s32 1, %s10
    $region7: #{tpu_custom_call.1} parent=1 // loop_footer_branch
      %9 = sbr.rel target = $region3
    $region8: #{tpu_custom_call.1} parent=1 // loop_exit
      _
    %353 = vsyncpa [#allocation3], 1
    %s354 = scalar_lea.sflag [#allocation3], 1
    %355 = vsyncpa %s354, 1

</llo_original>
